<compile_context>
chip_gen: v5e
topology: v5e:2x2
jax: 0.10.0
libtpu: 0.0.40
codegen_flags: <defaults>
</compile_context>

<pallas_src>
import jax
import jax.numpy as jnp
from jax.experimental import pallas as pl
from jax.experimental.pallas import tpu as pltpu


LN_EPS = 1e-6
RMS_EPS = 1e-6

# ---------------------------------------------------------------------------
# tiling / VMEM helpers
# ---------------------------------------------------------------------------

_VMEM_LIMIT = None


def _vmem_limit_bytes() -> int:
    """Generation-aware scoped-VMEM limit with headroom below physical."""
    global _VMEM_LIMIT
    if _VMEM_LIMIT is None:
        cap = 128 * 1024 * 1024
        try:
            cap = int(getattr(pltpu.get_tpu_info(), "vmem_capacity_bytes", cap))
        except Exception:
            pass
        _VMEM_LIMIT = int(min(cap * 3 // 4, 96 * 1024 * 1024))
    return _VMEM_LIMIT


def _pick_tile(n: int, target: int, align: int) -> int:
    """Largest legal tile <= target; full extent if the whole axis fits."""
    if n <= target:
        return n                      # full-extent block is always legal
    return max(align, (target // align) * align)


def _params(semantics):
    return pltpu.CompilerParams(
        dimension_semantics=semantics,
        vmem_limit_bytes=_vmem_limit_bytes(),
    )


# ---------------------------------------------------------------------------
# K1: modulation  (silu(vec) @ Wmod + bmod)
# ---------------------------------------------------------------------------

def _modulation_kernel(vec_ref, w_ref, b_ref, o_ref):
    v = jax.nn.silu(vec_ref[...].astype(jnp.float32))            # (B, H)
    o_ref[...] = (
        jnp.dot(v, w_ref[...].astype(jnp.float32),
                preferred_element_type=jnp.float32)
        + b_ref[...].astype(jnp.float32)
    ).astype(o_ref.dtype)


def modulation(vec, w_mod, b_mod, *, col_tile_target=512):
    B, H = vec.shape
    N = w_mod.shape[1]
    tn = _pick_tile(N, col_tile_target, 128)
    return pl.pallas_call(
        _modulation_kernel,
        out_shape=jax.ShapeDtypeStruct((B, N), vec.dtype),
        grid=(pl.cdiv(N, tn),),
        in_specs=[
            pl.BlockSpec((B, H), lambda j: (0, 0)),
            pl.BlockSpec((H, tn), lambda j: (0, j)),
            pl.BlockSpec((1, tn), lambda j: (0, j)),
        ],
        out_specs=pl.BlockSpec((B, tn), lambda j: (0, j)),
        compiler_params=_params(("parallel",)),
    )(vec, w_mod, b_mod.reshape(1, N))


# ---------------------------------------------------------------------------
# K2: fused pre-norm (LayerNorm) + modulation + linear1
# ---------------------------------------------------------------------------

def _norm_mod_linear1_kernel(x_ref, shift_ref, scale_ref, w_ref, b_ref,
                             o_ref, xm_ref):
    # Compute (LayerNorm + modulation) once per row tile and keep it resident
    # in VMEM across all output-column tiles (innermost grid axis).
    @pl.when(pl.program_id(2) == 0)
    def _():
        xf = x_ref[0].astype(jnp.float32)                        # (tl, H)
        mu = jnp.mean(xf, axis=-1, keepdims=True)
        xc = xf - mu
        var = jnp.mean(xc * xc, axis=-1, keepdims=True)
        xn = xc * jax.lax.rsqrt(var + LN_EPS)
        xm_ref[...] = (xn * (1.0 + scale_ref[0].astype(jnp.float32))
                       + shift_ref[0].astype(jnp.float32))

    o_ref[0] = (
        jnp.dot(xm_ref[...], w_ref[...].astype(jnp.float32),
                preferred_element_type=jnp.float32)
        + b_ref[...].astype(jnp.float32)
    ).astype(o_ref.dtype)


def norm_mod_linear1(x, shift, scale, w1, b1, *,
                     row_tile_target=256, col_tile_target=512):
    B, L, H = x.shape
    N = w1.shape[1]
    tl = _pick_tile(L, row_tile_target, 8)
    tn = _pick_tile(N, col_tile_target, 128)
    grid = (B, pl.cdiv(L, tl), pl.cdiv(N, tn))
    return pl.pallas_call(
        _norm_mod_linear1_kernel,
        out_shape=jax.ShapeDtypeStruct((B, L, N), x.dtype),
        grid=grid,
        in_specs=[
            pl.BlockSpec((1, tl, H), lambda b, i, j: (b, i, 0)),
            pl.BlockSpec((1, 1, H), lambda b, i, j: (b, 0, 0)),
            pl.BlockSpec((1, 1, H), lambda b, i, j: (b, 0, 0)),
            pl.BlockSpec((H, tn), lambda b, i, j: (0, j)),
            pl.BlockSpec((1, tn), lambda b, i, j: (0, j)),
        ],
        out_specs=pl.BlockSpec((1, tl, tn), lambda b, i, j: (b, i, j)),
        scratch_shapes=[pltpu.VMEM((tl, H), jnp.float32)],
        compiler_params=_params(("parallel", "parallel", "arbitrary")),
    )(x, shift, scale, w1, b1.reshape(1, N))


# ---------------------------------------------------------------------------
# K3: fused QK-RMSNorm + RoPE + attention   (one (batch, head) per step)
# ---------------------------------------------------------------------------

def _qknorm_rope_attention_kernel(q_ref, k_ref, v_ref, qs_ref, ks_ref,
                                  m1_ref, m2_ref, o_ref):
    D = q_ref.shape[-1]
    D2 = D // 2
    q = q_ref[0, 0].astype(jnp.float32)                          # (L, D)
    k = k_ref[0, 0].astype(jnp.float32)
    v = v_ref[0, 0].astype(jnp.float32)

    # QK RMSNorm over the head dim.
    q = q * jax.lax.rsqrt(jnp.mean(q * q, axis=-1, keepdims=True) + RMS_EPS)
    q = q * qs_ref[...].astype(jnp.float32)
    k = k * jax.lax.rsqrt(jnp.mean(k * k, axis=-1, keepdims=True) + RMS_EPS)
    k = k * ks_ref[...].astype(jnp.float32)

    # RoPE in split-half layout:  out = x * m1 + swap_halves(x) * m2.
    m1 = m1_ref[0].astype(jnp.float32)                           # (L, D)
    m2 = m2_ref[0].astype(jnp.float32)
    q_sw = jnp.concatenate([q[:, D2:], q[:, :D2]], axis=-1)
    k_sw = jnp.concatenate([k[:, D2:], k[:, :D2]], axis=-1)
    q = q * m1 + q_sw * m2
    k = k * m1 + k_sw * m2

    # Attention over the full sequence for this (batch, head).
    s = jax.lax.dot_general(q, k, (((1,), (1,)), ((), ())),
                            preferred_element_type=jnp.float32)  # (L, L)
    s = s * (D ** -0.5)
    s = s - jnp.max(s, axis=-1, keepdims=True)
    p = jnp.exp(s)
    p = p / jnp.sum(p, axis=-1, keepdims=True)
    o_ref[0, 0] = jnp.dot(p, v,
                          preferred_element_type=jnp.float32).astype(o_ref.dtype)


def qknorm_rope_attention(q, k, v, q_scale, k_scale, m1, m2):
    B, Hn, L, D = q.shape
    return pl.pallas_call(
        _qknorm_rope_attention_kernel,
        out_shape=jax.ShapeDtypeStruct((B, Hn, L, D), v.dtype),
        grid=(B, Hn),
        in_specs=[
            pl.BlockSpec((1, 1, L, D), lambda b, h: (b, h, 0, 0)),
            pl.BlockSpec((1, 1, L, D), lambda b, h: (b, h, 0, 0)),
            pl.BlockSpec((1, 1, L, D), lambda b, h: (b, h, 0, 0)),
            pl.BlockSpec((1, D), lambda b, h: (0, 0)),
            pl.BlockSpec((1, D), lambda b, h: (0, 0)),
            pl.BlockSpec((1, L, D), lambda b, h: (b, 0, 0)),
            pl.BlockSpec((1, L, D), lambda b, h: (b, 0, 0)),
        ],
        out_specs=pl.BlockSpec((1, 1, L, D), lambda b, h: (b, h, 0, 0)),
        compiler_params=_params(("parallel", "parallel")),
    )(q, k, v, q_scale, k_scale, m1, m2)


# ---------------------------------------------------------------------------
# K4: fused tanh-GELU(mlp) + linear2 + gate + residual
# ---------------------------------------------------------------------------

def _gelu_linear2_residual_kernel(attn_ref, mlp_ref, x_ref, gate_ref,
                                  w2a_ref, w2b_ref, b_ref, o_ref, act_ref):
    @pl.when(pl.program_id(2) == 0)
    def _():
        act_ref[...] = jax.nn.gelu(mlp_ref[0].astype(jnp.float32),
                                   approximate=True)

    out = jnp.dot(attn_ref[0].astype(jnp.float32),
                  w2a_ref[...].astype(jnp.float32),
                  preferred_element_type=jnp.float32)
    out = out + jnp.dot(act_ref[...], w2b_ref[...].astype(jnp.float32),
                        preferred_element_type=jnp.float32)
    out = out + b_ref[...].astype(jnp.float32)
    o_ref[0] = (x_ref[0].astype(jnp.float32)
                + gate_ref[0].astype(jnp.float32) * out).astype(o_ref.dtype)


def gelu_linear2_residual(attn, mlp, x, gate, w2a, w2b, b2, *,
                          row_tile_target=128, col_tile_target=256):
    B, L, H = x.shape
    M = mlp.shape[-1]
    tl = _pick_tile(L, row_tile_target, 8)
    tn = _pick_tile(H, col_tile_target, 128)
    grid = (B, pl.cdiv(L, tl), pl.cdiv(H, tn))
    return pl.pallas_call(
        _gelu_linear2_residual_kernel,
        out_shape=jax.ShapeDtypeStruct((B, L, H), x.dtype),
        grid=grid,
        in_specs=[
            pl.BlockSpec((1, tl, H), lambda b, i, j: (b, i, 0)),
            pl.BlockSpec((1, tl, M), lambda b, i, j: (b, i, 0)),
            pl.BlockSpec((1, tl, tn), lambda b, i, j: (b, i, j)),
            pl.BlockSpec((1, 1, tn), lambda b, i, j: (b, 0, j)),
            pl.BlockSpec((H, tn), lambda b, i, j: (0, j)),
            pl.BlockSpec((M, tn), lambda b, i, j: (0, j)),
            pl.BlockSpec((1, tn), lambda b, i, j: (0, j)),
        ],
        out_specs=pl.BlockSpec((1, tl, tn), lambda b, i, j: (b, i, j)),
        scratch_shapes=[pltpu.VMEM((tl, M), jnp.float32)],
        compiler_params=_params(("parallel", "parallel", "arbitrary")),
    )(attn, mlp, x, gate, w2a, w2b, b2.reshape(1, H))


# ---------------------------------------------------------------------------
# full SingleStreamBlock forward
# ---------------------------------------------------------------------------

def single_stream_block(x, vec, pe, params, num_heads):
    B, L, H = x.shape
    D = H // num_heads

    # --- modulation ---
    mod = modulation(vec, params["mod_w"], params["mod_b"])          # (B, 3H)
    shift = mod[:, None, 0 * H:1 * H]
    scale = mod[:, None, 1 * H:2 * H]
    gate = mod[:, None, 2 * H:3 * H]

    # --- fused pre-norm + modulation + linear1 ---
    lin1 = norm_mod_linear1(x, shift, scale, params["w1"], params["b1"])
    qkv, mlp = lin1[..., :3 * H], lin1[..., 3 * H:]

    def heads_view(t):
        return t.reshape(B, L, num_heads, D).transpose(0, 2, 1, 3)
    q = heads_view(qkv[..., 0 * H:1 * H])
    k = heads_view(qkv[..., 1 * H:2 * H])
    v = heads_view(qkv[..., 2 * H:3 * H])

    # Deinterleave q/k (even head-dims first, odd second).  Attention output is
    # invariant to this shared permutation of q/k features, and it turns the
    # interleaved-pair RoPE into a lane-dense half-swap inside the kernel.
    def deinterleave(t):
        return jnp.concatenate([t[..., 0::2], t[..., 1::2]], axis=-1)
    q = deinterleave(q)
    k = deinterleave(k)
    q_scale = deinterleave(params["q_scale"].reshape(1, D))
    k_scale = deinterleave(params["k_scale"].reshape(1, D))

    # RoPE coefficients in split-half layout from pe: (B, 1, L, D/2, 2, 2).
    pe_f = jnp.broadcast_to(pe.astype(jnp.float32),
                            (B, 1, L, D // 2, 2, 2))[:, 0]          # (B,L,D/2,2,2)
    m1 = jnp.concatenate([pe_f[..., 0, 0], pe_f[..., 1, 1]], axis=-1)  # (B,L,D)
    m2 = jnp.concatenate([pe_f[..., 0, 1], pe_f[..., 1, 0]], axis=-1)

    attn = qknorm_rope_attention(q, k, v, q_scale, k_scale, m1, m2)
    attn = attn.transpose(0, 2, 1, 3).reshape(B, L, H)

    # --- fused GELU(mlp) + linear2 + gate + residual ---
    out = gelu_linear2_residual(attn, mlp, x, gate,
                                params["w2"][:H], params["w2"][H:],
                                params["b2"])
    if out.dtype == jnp.float16:
        out = jnp.nan_to_num(out, nan=0.0, posinf=65504.0, neginf=-65504.0)
    return out


# ---------------------------------------------------------------------------
# pure-JAX reference (faithful to the PyTorch module)
# ---------------------------------------------------------------------------

def single_stream_block_ref(x, vec, pe, params, num_heads):
    B, L, H = x.shape
    D = H // num_heads
    P = jax.lax.Precision.HIGHEST
    f32 = jnp.float32

    mod = (jnp.dot(jax.nn.silu(vec.astype(f32)), params["mod_w"].astype(f32),
                   precision=P) + params["mod_b"].astype(f32))
    shift = mod[:, None, 0 * H:1 * H]
    scale = mod[:, None, 1 * H:2 * H]
    gate = mod[:, None, 2 * H:3 * H]

    xf = x.astype(f32)
    mu = jnp.mean(xf, axis=-1, keepdims=True)
    var = jnp.mean((xf - mu) ** 2, axis=-1, keepdims=True)
    xn = (xf - mu) * jax.lax.rsqrt(var + LN_EPS)
    xm = xn * (1.0 + scale) + shift

    lin1 = (jnp.dot(xm, params["w1"].astype(f32), precision=P)
            + params["b1"].astype(f32))
    qkv, mlp = lin1[..., :3 * H], lin1[..., 3 * H:]
    qkv = qkv.reshape(B, L, 3, num_heads, D).transpose(2, 0, 3, 1, 4)
    q, k, v = qkv[0], qkv[1], qkv[2]

    def rms(t, s):
        return t * jax.lax.rsqrt(jnp.mean(t * t, axis=-1, keepdims=True)
                                 + RMS_EPS) * s
    q = rms(q, params["q_scale"].astype(f32))
    k = rms(k, params["k_scale"].astype(f32))

    pe_f = pe.astype(f32)

    def rot(t):
        ts = t.reshape(*t.shape[:-1], -1, 1, 2)
        return (pe_f[..., 0] * ts[..., 0]
                + pe_f[..., 1] * ts[..., 1]).reshape(t.shape)
    q, k = rot(q), rot(k)

    s = jnp.einsum("bhqd,bhkd->bhqk", q, k, precision=P) * (D ** -0.5)
    p = jax.nn.softmax(s, axis=-1)
    attn = jnp.einsum("bhqk,bhkd->bhqd", p, v, precision=P)
    attn = attn.transpose(0, 2, 1, 3).reshape(B, L, H)

    out = (jnp.dot(jnp.concatenate([attn, jax.nn.gelu(mlp, approximate=True)],
                                   axis=-1),
                   params["w2"].astype(f32), precision=P)
           + params["b2"].astype(f32))
    return (xf + gate * out).astype(x.dtype)


# ---------------------------------------------------------------------------
# demo / self-test
# ---------------------------------------------------------------------------

if __name__ == "__main__":
    batch, seq, hidden, num_heads = 2, 16, 64, 2
    mlp_ratio = 4.0
    head_dim = hidden // num_heads
    mlp_hidden = int(hidden * mlp_ratio)
    n1 = 3 * hidden + mlp_hidden
    f32 = jnp.float32

    key = jax.random.PRNGKey(0)
    ks = jax.random.split(key, 10)

    x = jax.random.normal(ks[0], (batch, seq, hidden), dtype=f32)
    vec = jax.random.normal(ks[1], (batch, hidden), dtype=f32)

    def w_init(k, shape, fan_in):
        return (fan_in ** -0.5) * jax.random.normal(k, shape, dtype=f32)

    params = dict(
        mod_w=w_init(ks[2], (hidden, 3 * hidden), hidden),
        mod_b=0.02 * jax.random.normal(ks[3], (3 * hidden,), dtype=f32),
        w1=w_init(ks[4], (hidden, n1), hidden),
        b1=0.02 * jax.random.normal(ks[5], (n1,), dtype=f32),
        q_scale=1.0 + 0.1 * jax.random.normal(ks[6], (head_dim,), dtype=f32),
        k_scale=1.0 + 0.1 * jax.random.normal(ks[7], (head_dim,), dtype=f32),
        w2=w_init(ks[8], (hidden + mlp_hidden, hidden), hidden + mlp_hidden),
        b2=0.02 * jax.random.normal(ks[9], (hidden,), dtype=f32),
    )

    # flux-style rope positional encoding: (B, 1, L, D/2, 2, 2)
    pos = jnp.broadcast_to(jnp.arange(seq, dtype=f32), (batch, seq))
    omega = 1.0 / (10000.0 ** (jnp.arange(0, head_dim, 2, dtype=f32) / head_dim))
    ang = jnp.einsum("bn,d->bnd", pos, omega)                    # (B, L, D/2)
    pe = jnp.stack([jnp.cos(ang), -jnp.sin(ang),
                    jnp.sin(ang), jnp.cos(ang)], axis=-1)
    pe = pe.reshape(batch, seq, head_dim // 2, 2, 2)[:, None]    # (B,1,L,D/2,2,2)

    y = single_stream_block(x, vec, pe, params, num_heads)
    jax.block_until_ready(y)

    y_ref = single_stream_block_ref(x, vec, pe, params, num_heads)
    assert y.shape == x.shape and y.dtype == x.dtype
    # Tolerance covers MXU pass-precision differences vs the HIGHEST-precision
    # pure-JAX reference (both paths accumulate in f32).
    assert jnp.allclose(y, y_ref, atol=2e-2, rtol=2e-2), (
        float(jnp.max(jnp.abs(y - y_ref))))
    print("KERNEL_OK")
</pallas_src>

<mosaic_0001>
module attributes {stable_mosaic.version = 11 : i64} {
  func.func @_modulation_kernel(%arg0: i32, %arg1: memref<2x64xf32, #tpu.memory_space<vmem>>, %arg2: memref<64x192xf32, #tpu.memory_space<vmem>>, %arg3: memref<1x192xf32, #tpu.memory_space<vmem>>, %arg4: memref<2x192xf32, #tpu.memory_space<vmem>>) attributes {dimension_semantics = [#tpu.dimension_semantics<parallel>], iteration_bounds = array<i64: 1>, scalar_prefetch = 0 : i64, scratch_operands = 0 : i64, tpu.core_type = #tpu.core_type<tc>, window_params = [{pipeline_mode = #tpu.pipeline_mode<synchronous>, transform_indices = @transform_0, window_bounds = array<i64: 2, 64>}, {transform_indices = @transform_1, window_bounds = array<i64: 64, 192>}, {transform_indices = @transform_2, window_bounds = array<i64: 1, 192>}, {transform_indices = @transform_3, window_bounds = array<i64: 2, 192>}]} {
    %c0 = arith.constant 0 : index
    %c0_0 = arith.constant 0 : index
    %0 = vector.load %arg1[%c0, %c0_0] : memref<2x64xf32, #tpu.memory_space<vmem>>, vector<2x64xf32>
    %1 = arith.negf %0 : vector<2x64xf32>
    %2 = math.exp %1 : vector<2x64xf32>
    %cst = arith.constant 1.000000e+00 : f32
    %3 = vector.broadcast %cst : f32 to vector<2x64xf32>
    %4 = arith.addf %3, %2 : vector<2x64xf32>
    %5 = arith.divf %3, %4 : vector<2x64xf32>
    %6 = arith.mulf %0, %5 : vector<2x64xf32>
    %c0_1 = arith.constant 0 : index
    %c0_2 = arith.constant 0 : index
    %7 = vector.load %arg2[%c0_1, %c0_2] : memref<64x192xf32, #tpu.memory_space<vmem>>, vector<64x192xf32>
    %cst_3 = arith.constant dense<0.000000e+00> : vector<2x192xf32>
    %8 = tpu.matmul %6, %7, %cst_3 {dimension_numbers = #tpu.dot_dimension_numbers<[1], [0], [0], [1], [0, 0, 1, 1], [], []>} : vector<2x64xf32>, vector<64x192xf32>, vector<2x192xf32> -> vector<2x192xf32>
    %c0_4 = arith.constant 0 : index
    %c0_5 = arith.constant 0 : index
    %9 = vector.load %arg3[%c0_4, %c0_5] : memref<1x192xf32, #tpu.memory_space<vmem>>, vector<1x192xf32>
    %10 = vector.broadcast %9 : vector<1x192xf32> to vector<2x192xf32>
    %11 = arith.addf %8, %10 : vector<2x192xf32>
    %c0_6 = arith.constant 0 : index
    %c0_7 = arith.constant 0 : index
    %12 = vector.load %arg4[%c0_6, %c0_7] : memref<2x192xf32, #tpu.memory_space<vmem>>, vector<2x192xf32>
    tpu.vector_store %arg4[%c0_6, %c0_7], %11 {strides = array<i32>} : memref<2x192xf32, #tpu.memory_space<vmem>>, vector<2x192xf32>,
    return
  }
  func.func @transform_0(%arg0: i32) -> (i32, i32) {
    %c0_i32 = arith.constant 0 : i32
    %c0_i32_0 = arith.constant 0 : i32
    %c0_i32_1 = arith.constant 0 : i32
    return %c0_i32, %c0_i32_0 : i32, i32
  }
  func.func @transform_1(%arg0: i32) -> (i32, i32) {
    %c0_i32 = arith.constant 0 : i32
    %c0_i32_0 = arith.constant 0 : i32
    return %c0_i32, %arg0 : i32, i32
  }
  func.func @transform_2(%arg0: i32) -> (i32, i32) {
    %c0_i32 = arith.constant 0 : i32
    %c0_i32_0 = arith.constant 0 : i32
    return %c0_i32, %arg0 : i32, i32
  }
  func.func @transform_3(%arg0: i32) -> (i32, i32) {
    %c0_i32 = arith.constant 0 : i32
    %c0_i32_0 = arith.constant 0 : i32
    return %c0_i32, %arg0 : i32, i32
  }
}

</mosaic_0001>

<llo_original>
// kernel: tpu_custom_call.1
$region0: #{tpu_custom_call.1}
  #allocation0 [shape = 'u32[]', space=smem, size = 0x4, offset = 0x4, fixed_abs, tag = 'smem constant byte address 0x4 - core index']
  #allocation1 [shape = 'u32[72,128]{1,0:T(1,128)}', space=vmem, size = 0x9000, scoped, tag = 'internal scratch']
  %s0 = inlined_call_operand.hbm [shape: f32[2,64], index: 0, kind: input, shape index: {}]
  %s1 = inlined_call_operand.hbm [shape: f32[64,192], index: 1, kind: input, shape index: {}]
  %s2 = inlined_call_operand.hbm [shape: f32[1,192], index: 2, kind: input, shape index: {}]
  %s3 = inlined_call_operand.hbm [shape: f32[2,192], index: 3, kind: output, shape index: {}]
  %s4 = sld [smem:[#allocation0]]
  $region34: #{tpu_custom_call.1} parent=0
    _
  %s6 = ssub.s32 1, %s4
  %s7 = scalar_select 0, %s6, %s4
  $region1: #{tpu_custom_call.1} parent=0
    #allocation2 [shape = 'u8[1024]{0}', space=vmem, size = 0x400, scoped, tag = 'input window, operand 0, single buffered']
    #allocation3 [shape = 's32[1]{0}', space=sflag, size = 0x4, scoped, tag = 'scoped memory for tpu_custom_call.1']
    #allocation4 [shape = 's32[1]{0}', space=sflag, size = 0x4, scoped, tag = 'scoped memory for tpu_custom_call.1']
    #allocation5 [shape = 'u8[65536]{0}', space=vmem, size = 0x10000, scoped, tag = 'input window, operand 1, single buffered']
    #allocation6 [shape = 's32[1]{0}', space=sflag, size = 0x4, scoped, tag = 'scoped memory for tpu_custom_call.1']
    #allocation7 [shape = 'u8[1024]{0}', space=vmem, size = 0x400, scoped, tag = 'input window, operand 2, single buffered']
    #allocation8 [shape = 'u8[2048]{0}', space=vmem, size = 0x800, scoped, tag = 'output window, operand 0, single buffered']
    %8 = vsyncpa [#allocation3], 0
    %9 = vsyncpa [#allocation6], 0
    %10 = vsyncpa [#allocation4], 0
    // Predicated region
    $region2: #{tpu_custom_call.1} parent=1 // pred_check
      _
    $region3: #{tpu_custom_call.1} parent=1 // pred_check_branch
      %12 = sbr.rel (0) target = $region5
    $region4: #{tpu_custom_call.1} parent=1 // pred_region
      %14 = vsyncadd [#allocation3], 0
      %s16 = sshll.u32 %s0, 4
      %s17 = int_to_ptr.hbm [resolvable:$true] %s16
      %s18 = sshll.u32 [#allocation2], 4
      %s19 = int_to_ptr.vmem [resolvable:$true] %s18
      %21 = dma.hbm_to_vmem [thread:$0]  %s17, 32, %s19, [#allocation3]
    $region5: #{tpu_custom_call.1} parent=1 // pred_fallthru
      _
    // Predicated region
    $region6: #{tpu_custom_call.1} parent=1 // pred_check
      _
    $region7: #{tpu_custom_call.1} parent=1 // pred_check_branch
      %23 = sbr.rel (0) target = $region9
    $region8: #{tpu_custom_call.1} parent=1 // pred_region
      %25 = vsyncadd [#allocation6], 0
      %s26 = sshll.u32 %s1, 4
      %s27 = int_to_ptr.hbm [resolvable:$true] %s26
      %s28 = sshll.u32 [#allocation5], 4
      %s29 = int_to_ptr.vmem [resolvable:$true] %s28
      %34 = dma.hbm_to_vmem [thread:$0]  %s27, 2048, %s29, [#allocation6], 256, 256, 16
    $region9: #{tpu_custom_call.1} parent=1 // pred_fallthru
      _
    // Predicated region
    $region10: #{tpu_custom_call.1} parent=1 // pred_check
      _
    $region11: #{tpu_custom_call.1} parent=1 // pred_check_branch
      %36 = sbr.rel (0) target = $region13
    $region12: #{tpu_custom_call.1} parent=1 // pred_region
      %38 = vsyncadd [#allocation6], 0
      %s40 = sshll.u32 %s2, 4
      %s41 = int_to_ptr.hbm [resolvable:$true] %s40
      %s42 = sshll.u32 [#allocation7], 4
      %s43 = int_to_ptr.vmem [resolvable:$true] %s42
      %45 = dma.hbm_to_vmem [thread:$0]  %s41, 32, %s43, [#allocation6]
    $region13: #{tpu_custom_call.1} parent=1 // pred_fallthru
      _
    // Predicated region
    $region14: #{tpu_custom_call.1} parent=1 // pred_check
      _
    $region15: #{tpu_custom_call.1} parent=1 // pred_check_branch
      %47 = sbr.rel (0) target = $region17
    $region16: #{tpu_custom_call.1} parent=1 // pred_region
      %49 = dma.done [#allocation3], 32
    $region17: #{tpu_custom_call.1} parent=1 // pred_fallthru
      _
    // Predicated region
    $region18: #{tpu_custom_call.1} parent=1 // pred_check
      _
    $region19: #{tpu_custom_call.1} parent=1 // pred_check_branch
      %51 = sbr.rel (0) target = $region21
    $region20: #{tpu_custom_call.1} parent=1 // pred_region
      %53 = dma.done [#allocation6], 2048
    $region21: #{tpu_custom_call.1} parent=1 // pred_fallthru
      _
    // Predicated region
    $region22: #{tpu_custom_call.1} parent=1 // pred_check
      _
    $region23: #{tpu_custom_call.1} parent=1 // pred_check_branch
      %55 = sbr.rel (0) target = $region25
    $region24: #{tpu_custom_call.1} parent=1 // pred_region
      %57 = dma.done [#allocation6], 32
    $region25: #{tpu_custom_call.1} parent=1 // pred_fallthru
      _
    %v58 = vld [vmem:[#allocation2] sm:$0x3]
    %v59 = vxor.u32 %v58, 2147483648
    %v60 = vmul.f32 %v59, 1.442695
    %v61 = vpow.pop %v60
    %v62 = vadd.f32 %v61, 1.0
    %v63 = vrcp.pop %v62
    %v64 = vmul.f32 %v62, %v63
    %v65 = vsub.f32 1.0, %v64
    %v66 = vmul.f32 %v63, %v65
    %v67 = vadd.f32 %v63, %v66
    %vm68 = vweird.f32 %v62
    %vm69 = vweird.f32 %v63
    %vm70 = vmor %vm68, %vm69
    %v71 = vsel %vm70, %v63, %v67
    %v72 = vand.u32 2147483647, %v62
    %vm73 = vcmp.eq.f32.partialorder %v72, 8.507059e+37
    %v74 = vand.u32 %v62, 2147483648
    %v75 = vor.u32 1.1754944e-38, %v74
    %v76 = vsel %vm73, %v75, %v71
    %v77 = vmul.f32 1.0, %v76
    %v78 = vmul.f32 %v58, %v77
    %v79 = vld [vmem:[#allocation5] sm:$0xff]
    %v80 = vld [vmem:[#allocation5 + $0x8] sm:$0xff]
    %v81 = vld [vmem:[#allocation5 + $0x10] sm:$0xff]
    %v82 = vld [vmem:[#allocation5 + $0x18] sm:$0xff]
    %v83 = vld [vmem:[#allocation5 + $0x20] sm:$0xff]
    %v84 = vld [vmem:[#allocation5 + $0x28] sm:$0xff]
    %v85 = vld [vmem:[#allocation5 + $0x30] sm:$0xff]
    %v86 = vld [vmem:[#allocation5 + $0x38] sm:$0xff]
    %v87 = vld [vmem:[#allocation5 + $0x40] sm:$0xff]
    %v88 = vld [vmem:[#allocation5 + $0x48] sm:$0xff]
    %v89 = vld [vmem:[#allocation5 + $0x50] sm:$0xff]
    %v90 = vld [vmem:[#allocation5 + $0x58] sm:$0xff]
    %v91 = vld [vmem:[#allocation5 + $0x60] sm:$0xff]
    %v92 = vld [vmem:[#allocation5 + $0x68] sm:$0xff]
    %v93 = vld [vmem:[#allocation5 + $0x70] sm:$0xff]
    %v94 = vld [vmem:[#allocation5 + $0x78] sm:$0xff]
    %v95 = vld [vmem:[#allocation7] sm:$0x3]
    %v97 = vperm.slane %v95, 0
    %v98 = vperm.slane %v95, 1
    %vm101 = vcmask 523264
    %v103 = vsel %vm101, %v78, 0
    %105 = vmatpush.msra.mxu0 0.0
    %106 = vmatpush.msra.mxu0 0.0
    %107 = vmatpush.msra.mxu0 0.0
    %108 = vmatpush.msra.mxu0 0.0
    %109 = vmatpush.msra.mxu0 0.0
    %110 = vmatpush.msra.mxu0 0.0
    %111 = vmatpush.msra.mxu0 0.0
    %112 = vmatpush.msra.mxu0 0.0
    %113 = vmatpush.msra.mxu0 %v93
    %114 = vmatpush.msra.mxu0 %v91
    %115 = vmatpush.msra.mxu0 %v89
    %116 = vmatpush.msra.mxu0 %v87
    %117 = vmatpush.msra.mxu0 %v85
    %118 = vmatpush.msra.mxu0 %v83
    %119 = vmatpush.msra.mxu0 %v81
    %120 = vmatpush.msra.mxu0 %v79
    %121 = vmatmul.f32.gmra.mxu0 %v103
    %v122 = vpop.f32.mrf.mxu0
    %v123 = vadd.f32 %v97, %v122
    %124 = vdwg.mxu0
    %125 = vmatpush.msra.mxu0 0.0
    %126 = vmatpush.msra.mxu0 0.0
    %127 = vmatpush.msra.mxu0 0.0
    %128 = vmatpush.msra.mxu0 0.0
    %129 = vmatpush.msra.mxu0 0.0
    %130 = vmatpush.msra.mxu0 0.0
    %131 = vmatpush.msra.mxu0 0.0
    %132 = vmatpush.msra.mxu0 0.0
    %133 = vmatpush.msra.mxu0 %v94
    %134 = vmatpush.msra.mxu0 %v92
    %135 = vmatpush.msra.mxu0 %v90
    %136 = vmatpush.msra.mxu0 %v88
    %137 = vmatpush.msra.mxu0 %v86
    %138 = vmatpush.msra.mxu0 %v84
    %139 = vmatpush.msra.mxu0 %v82
    %140 = vmatpush.msra.mxu0 %v80
    %141 = vmatmul.f32.gmra.mxu0 %v103
    %v142 = vpop.f32.mrf.mxu0
    %v143 = vadd.f32 %v98, %v142
    %144 = vdwg.mxu0
    %v147 = vrot.slane %v143, 6
    %vm148 = vcmask 1041408
    %v149 = vsel %vm148, %v123, %v147
    %vm151 = vcmask 519170
    %vm152 = vmor %vm151, %vm148
    %153 = vst.msk [vmem:[#allocation8] sm:$0xf] %vm152, %v149
    // Predicated region
    $region26: #{tpu_custom_call.1} parent=1 // pred_check
      _
    $region27: #{tpu_custom_call.1} parent=1 // pred_check_branch
      %155 = sbr.rel (0) target = $region29
    $region28: #{tpu_custom_call.1} parent=1 // pred_region
      %157 = vsyncadd [#allocation4], 0
      %s159 = sshll.u32 [#allocation8], 4
      %s160 = int_to_ptr.vmem [resolvable:$true] %s159
      %s161 = sshll.u32 %s3, 4
      %s162 = int_to_ptr.hbm [resolvable:$true] %s161
      %164 = dma.vmem_to_hbm [thread:$0]  %s160, 64, %s162, [#allocation4]
    $region29: #{tpu_custom_call.1} parent=1 // pred_fallthru
      _
    // Predicated region
    $region30: #{tpu_custom_call.1} parent=1 // pred_check
      _
    $region31: #{tpu_custom_call.1} parent=1 // pred_check_branch
      %166 = sbr.rel (0) target = $region33
    $region32: #{tpu_custom_call.1} parent=1 // pred_region
      %168 = dma.done [#allocation4], 64
    $region33: #{tpu_custom_call.1} parent=1 // pred_fallthru
      _
    %169 = vsyncpa [#allocation3], 1
    %170 = vsyncpa [#allocation6], 1
    %171 = vsyncpa [#allocation4], 1

</llo_original>
